<compile_context>
chip_gen: v5e
topology: v5e:2x2
jax: 0.10.0
libtpu: 0.0.40
codegen_flags: <defaults>
</compile_context>

<pallas_src>
import functools

import jax
import jax.numpy as jnp
import numpy as np
from jax.experimental import pallas as pl
from jax.experimental.pallas import tpu as pltpu


def _round_up(x: int, m: int) -> int:
    return ((x + m - 1) // m) * m


def _fused_mlp_kernel(*refs, layer_cfg):
    """Fused multi-layer MLP body.

    refs = (x_ref, *param_refs, o_ref); per layer the params are
      w_t [Din, Dout] (pre-transposed), b [1, Dout],
      and, if that layer has LayerNorm, gamma [1, Dout], beta [1, Dout].
    layer_cfg is a static tuple of (use_ln, act) per layer.
    """
    x_ref = refs[0]
    o_ref = refs[-1]
    param_refs = refs[1:-1]

    y = x_ref[...]                                     # dot dtype (f32 or bf16)
    idx = 0
    for use_ln, act in layer_cfg:
        w_ref, b_ref = param_refs[idx], param_refs[idx + 1]
        idx += 2
        g_ref = beta_ref = None
        if use_ln:
            g_ref, beta_ref = param_refs[idx], param_refs[idx + 1]
            idx += 2

        # MXU matmul with f32 accumulation; weights already [Din, Dout] so no
        # in-kernel transpose is needed.
        y = jnp.dot(y.astype(w_ref.dtype), w_ref[...],
                    preferred_element_type=jnp.float32)
        y = y + b_ref[...].astype(jnp.float32)

        if use_ln:
            # One-pass LayerNorm stats (nn.LayerNorm, eps=1e-5, affine).
            d = y.shape[-1]
            inv_d = 1.0 / d
            s1 = jnp.sum(y, axis=-1, keepdims=True)
            s2 = jnp.sum(y * y, axis=-1, keepdims=True)
            mu = s1 * inv_d
            var = s2 * inv_d - mu * mu
            scale = g_ref[...].astype(jnp.float32) * jax.lax.rsqrt(var + 1e-5)
            y = (y - mu) * scale + beta_ref[...].astype(jnp.float32)

        if act == "relu":
            y = jnp.maximum(y, 0.0)
        elif act == "tanh":
            y = jnp.tanh(y)
        elif act == "softmax":
            # TODO(synk): nn.Softmax() with dim=None uses a legacy ndim rule;
            # for 2-D inputs that is the last dim, which is what we use here.
            m = jnp.max(y, axis=-1, keepdims=True)
            e = jnp.exp(y - m)
            y = e * pl.reciprocal(jnp.sum(e, axis=-1, keepdims=True), approx=True)
        # act is None -> identity (last layer when act_last=False)

    # NOTE: if the final output dim is < 128 lanes this store is masked; batch
    # more heads / tokens per call if this MLP head is invoked many times.
    o_ref[...] = y.astype(o_ref.dtype)


def mlp_forward(x, params, act_fn="relu", layer_norm=False, act_last=False,
                *, block_batch=512, dot_dtype=None):
    """Run the full MLP as a single fused Pallas kernel.

    params: list of (w [Dout, Din], b [Dout], gamma [Dout] | None, beta | None)
    dot_dtype: dtype fed to the MXU (e.g. jnp.bfloat16 on v6e/v7x). LayerNorm /
               activation math always stays in f32 on the accumulator.
    """
    if dot_dtype is None:
        dot_dtype = x.dtype
    dot_dtype = jnp.dtype(dot_dtype)
    B, Din = x.shape
    num_layers = len(params)
    out_dtype = x.dtype

    # Batch tile: multiple of 8 sublanes, capped so double-buffered x/out tiles
    # plus VMEM-resident weights fit comfortably on every generation (v7x 64MiB).
    TB = min(block_batch, _round_up(B, 8))
    B_pad = _round_up(B, TB)
    x_in = x if B_pad == B else jnp.pad(x, ((0, B_pad - B), (0, 0)))
    x_in = x_in.astype(dot_dtype)

    layer_cfg = []
    flat_args = []
    in_specs = [pl.BlockSpec((TB, Din), lambda i: (i, 0))]
    flops = 0
    transcendentals = 0
    bytes_accessed = int(x_in.size) * x_in.dtype.itemsize

    for li, (w, b, gamma, beta) in enumerate(params):
        dout, din = w.shape
        is_last = li == num_layers - 1
        apply_extras = (not is_last) or act_last
        use_ln = bool(layer_norm and apply_extras and gamma is not None)
        act = act_fn if apply_extras else None
        layer_cfg.append((use_ln, act))

        # Pre-transpose once on the host: [Dout, Din] -> [Din, Dout].
        w_t = jnp.transpose(w).astype(dot_dtype)
        b2 = b.reshape(1, dout).astype(jnp.float32)
        new_args = [w_t, b2]
        # Constant index maps -> same block every grid step -> stays resident
        # in VMEM while batch tiles stream through.
        new_specs = [
            pl.BlockSpec((din, dout), lambda i: (0, 0)),
            pl.BlockSpec((1, dout), lambda i: (0, 0)),
        ]
        if use_ln:
            new_args += [gamma.reshape(1, dout).astype(jnp.float32),
                         beta.reshape(1, dout).astype(jnp.float32)]
            new_specs += [
                pl.BlockSpec((1, dout), lambda i: (0, 0)),
                pl.BlockSpec((1, dout), lambda i: (0, 0)),
            ]
        flat_args += new_args
        in_specs += new_specs

        flops += 2 * B_pad * din * dout
        if act in ("tanh", "softmax"):
            transcendentals += B_pad * dout
        if use_ln:
            transcendentals += B_pad                      # rsqrt per row
        bytes_accessed += sum(int(a.size) * a.dtype.itemsize for a in new_args)

    dout_last = params[-1][0].shape[0]
    bytes_accessed += B_pad * dout_last * jnp.dtype(out_dtype).itemsize

    kernel = functools.partial(_fused_mlp_kernel, layer_cfg=tuple(layer_cfg))

    out = pl.pallas_call(
        kernel,
        out_shape=jax.ShapeDtypeStruct((B_pad, dout_last), out_dtype),
        grid=(B_pad // TB,),
        in_specs=in_specs,
        out_specs=pl.BlockSpec((TB, dout_last), lambda i: (i, 0)),
        compiler_params=pltpu.CompilerParams(
            dimension_semantics=("parallel",)),
        cost_estimate=pl.CostEstimate(
            flops=int(flops),
            transcendentals=int(transcendentals),
            bytes_accessed=int(bytes_accessed)),
    )(x_in, *flat_args)

    return out[:B] if B_pad != B else out


def init_mlp_params(key, input_dim, hidden_dim, output_dim, layer_norm):
    """Deterministic synthetic params matching the PyTorch module's shapes."""
    dims = [input_dim] + list(hidden_dim) + [output_dim]
    params = []
    for i in range(len(dims) - 1):
        key, kw, kb = jax.random.split(key, 3)
        fan_in = dims[i]
        bound = 1.0 / np.sqrt(fan_in)
        w = jax.random.uniform(kw, (dims[i + 1], dims[i]), jnp.float32, -bound, bound)
        b = jax.random.uniform(kb, (dims[i + 1],), jnp.float32, -bound, bound)
        if layer_norm:
            gamma = jnp.ones((dims[i + 1],), jnp.float32)
            beta = jnp.zeros((dims[i + 1],), jnp.float32)
        else:
            gamma = beta = None
        params.append((w, b, gamma, beta))
    return params


def mlp_reference(x, params, act_fn="relu", layer_norm=False, act_last=False):
    """Pure-JAX reference mirroring nn.Sequential semantics (two-pass LN)."""
    num_layers = len(params)
    y = x
    for i, (w, b, gamma, beta) in enumerate(params):
        y = y @ w.T + b
        is_last = i == num_layers - 1
        if (not is_last) or act_last:
            if layer_norm:
                mu = jnp.mean(y, axis=-1, keepdims=True)
                var = jnp.mean((y - mu) ** 2, axis=-1, keepdims=True)
                y = (y - mu) / jnp.sqrt(var + 1e-5) * gamma + beta
            if act_fn == "relu":
                y = jnp.maximum(y, 0.0)
            elif act_fn == "tanh":
                y = jnp.tanh(y)
            elif act_fn == "softmax":
                y = jax.nn.softmax(y, axis=-1)
    return y


if __name__ == "__main__":
    # MLP(input_dim=32, hidden_dim=[64, 48], output_dim=8,
    #     act_fn='relu', layer_norm=True, act_last=False)
    input_dim, hidden_dim, output_dim = 32, [64, 48], 8
    act_fn, layer_norm, act_last = "relu", True, False
    batch = 8

    key = jax.random.PRNGKey(0)
    key, kx = jax.random.split(key)
    x = jax.random.normal(kx, (batch, input_dim), jnp.float32)
    params = init_mlp_params(key, input_dim, hidden_dim, output_dim, layer_norm)

    ref = mlp_reference(x, params, act_fn=act_fn, layer_norm=layer_norm,
                        act_last=act_last)

    # f32 MXU path (tight tolerance).
    out = mlp_forward(x, params, act_fn=act_fn, layer_norm=layer_norm,
                      act_last=act_last)
    out = jax.block_until_ready(out)
    np.testing.assert_allclose(np.asarray(out), np.asarray(ref),
                               rtol=2e-5, atol=2e-5)
    assert out.shape == (batch, output_dim)

    # bf16 MXU path (v6e/v7x recommendation) with f32 accumulation / LN math.
    out_bf16 = mlp_forward(x, params, act_fn=act_fn, layer_norm=layer_norm,
                           act_last=act_last, dot_dtype=jnp.bfloat16)
    out_bf16 = jax.block_until_ready(out_bf16)
    np.testing.assert_allclose(np.asarray(out_bf16), np.asarray(ref),
                               rtol=5e-2, atol=5e-2)

    print("KERNEL_OK")
</pallas_src>

<mosaic_0001>
module attributes {stable_mosaic.version = 11 : i64} {
  func.func @_fused_mlp_kernel(%arg0: i32, %arg1: memref<8x32xf32, #tpu.memory_space<vmem>>, %arg2: memref<32x64xf32, #tpu.memory_space<vmem>>, %arg3: memref<1x64xf32, #tpu.memory_space<vmem>>, %arg4: memref<1x64xf32, #tpu.memory_space<vmem>>, %arg5: memref<1x64xf32, #tpu.memory_space<vmem>>, %arg6: memref<64x48xf32, #tpu.memory_space<vmem>>, %arg7: memref<1x48xf32, #tpu.memory_space<vmem>>, %arg8: memref<1x48xf32, #tpu.memory_space<vmem>>, %arg9: memref<1x48xf32, #tpu.memory_space<vmem>>, %arg10: memref<48x8xf32, #tpu.memory_space<vmem>>, %arg11: memref<1x8xf32, #tpu.memory_space<vmem>>, %arg12: memref<8x8xf32, #tpu.memory_space<vmem>>) attributes {dimension_semantics = [#tpu.dimension_semantics<parallel>], iteration_bounds = array<i64: 1>, scalar_prefetch = 0 : i64, scratch_operands = 0 : i64, tpu.core_type = #tpu.core_type<tc>, window_params = [{transform_indices = @transform_0, window_bounds = array<i64: 8, 32>}, {pipeline_mode = #tpu.pipeline_mode<synchronous>, transform_indices = @transform_1, window_bounds = array<i64: 32, 64>}, {pipeline_mode = #tpu.pipeline_mode<synchronous>, transform_indices = @transform_2, window_bounds = array<i64: 1, 64>}, {pipeline_mode = #tpu.pipeline_mode<synchronous>, transform_indices = @transform_3, window_bounds = array<i64: 1, 64>}, {pipeline_mode = #tpu.pipeline_mode<synchronous>, transform_indices = @transform_4, window_bounds = array<i64: 1, 64>}, {pipeline_mode = #tpu.pipeline_mode<synchronous>, transform_indices = @transform_5, window_bounds = array<i64: 64, 48>}, {pipeline_mode = #tpu.pipeline_mode<synchronous>, transform_indices = @transform_6, window_bounds = array<i64: 1, 48>}, {pipeline_mode = #tpu.pipeline_mode<synchronous>, transform_indices = @transform_7, window_bounds = array<i64: 1, 48>}, {pipeline_mode = #tpu.pipeline_mode<synchronous>, transform_indices = @transform_8, window_bounds = array<i64: 1, 48>}, {pipeline_mode = #tpu.pipeline_mode<synchronous>, transform_indices = @transform_9, window_bounds = array<i64: 48, 8>}, {pipeline_mode = #tpu.pipeline_mode<synchronous>, transform_indices = @transform_10, window_bounds = array<i64: 1, 8>}, {transform_indices = @transform_11, window_bounds = array<i64: 8, 8>}]} {
    %c0 = arith.constant 0 : index
    %c0_0 = arith.constant 0 : index
    %0 = vector.load %arg1[%c0, %c0_0] : memref<8x32xf32, #tpu.memory_space<vmem>>, vector<8x32xf32>
    %c0_1 = arith.constant 0 : index
    %c0_2 = arith.constant 0 : index
    %1 = vector.load %arg2[%c0_1, %c0_2] : memref<32x64xf32, #tpu.memory_space<vmem>>, vector<32x64xf32>
    %cst = arith.constant dense<0.000000e+00> : vector<8x64xf32>
    %2 = tpu.matmul %0, %1, %cst {dimension_numbers = #tpu.dot_dimension_numbers<[1], [0], [0], [1], [0, 0, 1, 1], [], []>} : vector<8x32xf32>, vector<32x64xf32>, vector<8x64xf32> -> vector<8x64xf32>
    %c0_3 = arith.constant 0 : index
    %c0_4 = arith.constant 0 : index
    %3 = vector.load %arg3[%c0_3, %c0_4] : memref<1x64xf32, #tpu.memory_space<vmem>>, vector<1x64xf32>
    %4 = vector.broadcast %3 : vector<1x64xf32> to vector<8x64xf32>
    %5 = arith.addf %2, %4 : vector<8x64xf32>
    %cst_5 = arith.constant dense<0.000000e+00> : vector<8xf32>
    %6 = vector.multi_reduction <add>, %5, %cst_5 [1] : vector<8x64xf32> to vector<8xf32>
    %7 = vector.shape_cast %6 : vector<8xf32> to vector<8x1xf32>
    %8 = arith.mulf %5, %5 : vector<8x64xf32>
    %cst_6 = arith.constant dense<0.000000e+00> : vector<8xf32>
    %9 = vector.multi_reduction <add>, %8, %cst_6 [1] : vector<8x64xf32> to vector<8xf32>
    %10 = vector.shape_cast %9 : vector<8xf32> to vector<8x1xf32>
    %cst_7 = arith.constant 1.562500e-02 : f32
    %11 = vector.broadcast %cst_7 : f32 to vector<8x1xf32>
    %12 = arith.mulf %7, %11 : vector<8x1xf32>
    %cst_8 = arith.constant 1.562500e-02 : f32
    %13 = vector.broadcast %cst_8 : f32 to vector<8x1xf32>
    %14 = arith.mulf %10, %13 : vector<8x1xf32>
    %15 = arith.mulf %12, %12 : vector<8x1xf32>
    %16 = arith.subf %14, %15 : vector<8x1xf32>
    %c0_9 = arith.constant 0 : index
    %c0_10 = arith.constant 0 : index
    %17 = vector.load %arg4[%c0_9, %c0_10] : memref<1x64xf32, #tpu.memory_space<vmem>>, vector<1x64xf32>
    %cst_11 = arith.constant 9.99999974E-6 : f32
    %18 = vector.broadcast %cst_11 : f32 to vector<8x1xf32>
    %19 = arith.addf %16, %18 : vector<8x1xf32>
    %20 = math.rsqrt %19 : vector<8x1xf32>
    %21 = vector.broadcast %17 : vector<1x64xf32> to vector<8x64xf32>
    %22 = vector.broadcast %20 : vector<8x1xf32> to vector<8x64xf32>
    %23 = arith.mulf %21, %22 : vector<8x64xf32>
    %24 = vector.broadcast %12 : vector<8x1xf32> to vector<8x64xf32>
    %25 = arith.subf %5, %24 : vector<8x64xf32>
    %26 = arith.mulf %25, %23 : vector<8x64xf32>
    %c0_12 = arith.constant 0 : index
    %c0_13 = arith.constant 0 : index
    %27 = vector.load %arg5[%c0_12, %c0_13] : memref<1x64xf32, #tpu.memory_space<vmem>>, vector<1x64xf32>
    %28 = vector.broadcast %27 : vector<1x64xf32> to vector<8x64xf32>
    %29 = arith.addf %26, %28 : vector<8x64xf32>
    %cst_14 = arith.constant 0.000000e+00 : f32
    %30 = vector.broadcast %cst_14 : f32 to vector<8x64xf32>
    %31 = arith.maximumf %29, %30 : vector<8x64xf32>
    %c0_15 = arith.constant 0 : index
    %c0_16 = arith.constant 0 : index
    %32 = vector.load %arg6[%c0_15, %c0_16] : memref<64x48xf32, #tpu.memory_space<vmem>>, vector<64x48xf32>
    %cst_17 = arith.constant dense<0.000000e+00> : vector<8x48xf32>
    %33 = tpu.matmul %31, %32, %cst_17 {dimension_numbers = #tpu.dot_dimension_numbers<[1], [0], [0], [1], [0, 0, 1, 1], [], []>} : vector<8x64xf32>, vector<64x48xf32>, vector<8x48xf32> -> vector<8x48xf32>
    %c0_18 = arith.constant 0 : index
    %c0_19 = arith.constant 0 : index
    %34 = vector.load %arg7[%c0_18, %c0_19] : memref<1x48xf32, #tpu.memory_space<vmem>>, vector<1x48xf32>
    %35 = vector.broadcast %34 : vector<1x48xf32> to vector<8x48xf32>
    %36 = arith.addf %33, %35 : vector<8x48xf32>
    %cst_20 = arith.constant dense<0.000000e+00> : vector<8xf32>
    %37 = vector.multi_reduction <add>, %36, %cst_20 [1] : vector<8x48xf32> to vector<8xf32>
    %38 = vector.shape_cast %37 : vector<8xf32> to vector<8x1xf32>
    %39 = arith.mulf %36, %36 : vector<8x48xf32>
    %cst_21 = arith.constant dense<0.000000e+00> : vector<8xf32>
    %40 = vector.multi_reduction <add>, %39, %cst_21 [1] : vector<8x48xf32> to vector<8xf32>
    %41 = vector.shape_cast %40 : vector<8xf32> to vector<8x1xf32>
    %cst_22 = arith.constant 0.020833334 : f32
    %42 = vector.broadcast %cst_22 : f32 to vector<8x1xf32>
    %43 = arith.mulf %38, %42 : vector<8x1xf32>
    %cst_23 = arith.constant 0.020833334 : f32
    %44 = vector.broadcast %cst_23 : f32 to vector<8x1xf32>
    %45 = arith.mulf %41, %44 : vector<8x1xf32>
    %46 = arith.mulf %43, %43 : vector<8x1xf32>
    %47 = arith.subf %45, %46 : vector<8x1xf32>
    %c0_24 = arith.constant 0 : index
    %c0_25 = arith.constant 0 : index
    %48 = vector.load %arg8[%c0_24, %c0_25] : memref<1x48xf32, #tpu.memory_space<vmem>>, vector<1x48xf32>
    %cst_26 = arith.constant 9.99999974E-6 : f32
    %49 = vector.broadcast %cst_26 : f32 to vector<8x1xf32>
    %50 = arith.addf %47, %49 : vector<8x1xf32>
    %51 = math.rsqrt %50 : vector<8x1xf32>
    %52 = vector.broadcast %48 : vector<1x48xf32> to vector<8x48xf32>
    %53 = vector.broadcast %51 : vector<8x1xf32> to vector<8x48xf32>
    %54 = arith.mulf %52, %53 : vector<8x48xf32>
    %55 = vector.broadcast %43 : vector<8x1xf32> to vector<8x48xf32>
    %56 = arith.subf %36, %55 : vector<8x48xf32>
    %57 = arith.mulf %56, %54 : vector<8x48xf32>
    %c0_27 = arith.constant 0 : index
    %c0_28 = arith.constant 0 : index
    %58 = vector.load %arg9[%c0_27, %c0_28] : memref<1x48xf32, #tpu.memory_space<vmem>>, vector<1x48xf32>
    %59 = vector.broadcast %58 : vector<1x48xf32> to vector<8x48xf32>
    %60 = arith.addf %57, %59 : vector<8x48xf32>
    %cst_29 = arith.constant 0.000000e+00 : f32
    %61 = vector.broadcast %cst_29 : f32 to vector<8x48xf32>
    %62 = arith.maximumf %60, %61 : vector<8x48xf32>
    %c0_30 = arith.constant 0 : index
    %c0_31 = arith.constant 0 : index
    %63 = vector.load %arg10[%c0_30, %c0_31] : memref<48x8xf32, #tpu.memory_space<vmem>>, vector<48x8xf32>
    %cst_32 = arith.constant dense<0.000000e+00> : vector<8x8xf32>
    %64 = tpu.matmul %62, %63, %cst_32 {dimension_numbers = #tpu.dot_dimension_numbers<[1], [0], [0], [1], [0, 0, 1, 1], [], []>} : vector<8x48xf32>, vector<48x8xf32>, vector<8x8xf32> -> vector<8x8xf32>
    %c0_33 = arith.constant 0 : index
    %c0_34 = arith.constant 0 : index
    %65 = vector.load %arg11[%c0_33, %c0_34] : memref<1x8xf32, #tpu.memory_space<vmem>>, vector<1x8xf32>
    %66 = vector.broadcast %65 : vector<1x8xf32> to vector<8x8xf32>
    %67 = arith.addf %64, %66 : vector<8x8xf32>
    %c0_35 = arith.constant 0 : index
    %c0_36 = arith.constant 0 : index
    %68 = vector.load %arg12[%c0_35, %c0_36] : memref<8x8xf32, #tpu.memory_space<vmem>>, vector<8x8xf32>
    tpu.vector_store %arg12[%c0_35, %c0_36], %67 {strides = array<i32>} : memref<8x8xf32, #tpu.memory_space<vmem>>, vector<8x8xf32>,
    return
  }
  func.func @transform_0(%arg0: i32) -> (i32, i32) {
    %c0_i32 = arith.constant 0 : i32
    %c0_i32_0 = arith.constant 0 : i32
    return %arg0, %c0_i32 : i32, i32
  }
  func.func @transform_1(%arg0: i32) -> (i32, i32) {
    %c0_i32 = arith.constant 0 : i32
    %c0_i32_0 = arith.constant 0 : i32
    %c0_i32_1 = arith.constant 0 : i32
    return %c0_i32, %c0_i32_0 : i32, i32
  }
  func.func @transform_2(%arg0: i32) -> (i32, i32) {
    %c0_i32 = arith.constant 0 : i32
    %c0_i32_0 = arith.constant 0 : i32
    %c0_i32_1 = arith.constant 0 : i32
    return %c0_i32, %c0_i32_0 : i32, i32
  }
  func.func @transform_3(%arg0: i32) -> (i32, i32) {
    %c0_i32 = arith.constant 0 : i32
    %c0_i32_0 = arith.constant 0 : i32
    %c0_i32_1 = arith.constant 0 : i32
    return %c0_i32, %c0_i32_0 : i32, i32
  }
  func.func @transform_4(%arg0: i32) -> (i32, i32) {
    %c0_i32 = arith.constant 0 : i32
    %c0_i32_0 = arith.constant 0 : i32
    %c0_i32_1 = arith.constant 0 : i32
    return %c0_i32, %c0_i32_0 : i32, i32
  }
  func.func @transform_5(%arg0: i32) -> (i32, i32) {
    %c0_i32 = arith.constant 0 : i32
    %c0_i32_0 = arith.constant 0 : i32
    %c0_i32_1 = arith.constant 0 : i32
    return %c0_i32, %c0_i32_0 : i32, i32
  }
  func.func @transform_6(%arg0: i32) -> (i32, i32) {
    %c0_i32 = arith.constant 0 : i32
    %c0_i32_0 = arith.constant 0 : i32
    %c0_i32_1 = arith.constant 0 : i32
    return %c0_i32, %c0_i32_0 : i32, i32
  }
  func.func @transform_7(%arg0: i32) -> (i32, i32) {
    %c0_i32 = arith.constant 0 : i32
    %c0_i32_0 = arith.constant 0 : i32
    %c0_i32_1 = arith.constant 0 : i32
    return %c0_i32, %c0_i32_0 : i32, i32
  }
  func.func @transform_8(%arg0: i32) -> (i32, i32) {
    %c0_i32 = arith.constant 0 : i32
    %c0_i32_0 = arith.constant 0 : i32
    %c0_i32_1 = arith.constant 0 : i32
    return %c0_i32, %c0_i32_0 : i32, i32
  }
  func.func @transform_9(%arg0: i32) -> (i32, i32) {
    %c0_i32 = arith.constant 0 : i32
    %c0_i32_0 = arith.constant 0 : i32
    %c0_i32_1 = arith.constant 0 : i32
    return %c0_i32, %c0_i32_0 : i32, i32
  }
  func.func @transform_10(%arg0: i32) -> (i32, i32) {
    %c0_i32 = arith.constant 0 : i32
    %c0_i32_0 = arith.constant 0 : i32
    %c0_i32_1 = arith.constant 0 : i32
    return %c0_i32, %c0_i32_0 : i32, i32
  }
  func.func @transform_11(%arg0: i32) -> (i32, i32) {
    %c0_i32 = arith.constant 0 : i32
    %c0_i32_0 = arith.constant 0 : i32
    return %arg0, %c0_i32 : i32, i32
  }
}

</mosaic_0001>

<llo_original>
// kernel: tpu_custom_call.1
$region0: #{tpu_custom_call.1}
  #allocation0 [shape = 'u32[]', space=smem, size = 0x4, offset = 0x4, fixed_abs, tag = 'smem constant byte address 0x4 - core index']
  #allocation1 [shape = 'u32[72,128]{1,0:T(1,128)}', space=vmem, size = 0x9000, scoped, tag = 'internal scratch']
  %s0 = inlined_call_operand.vmem [shape: f32[8,32], index: 0, kind: input, shape index: {}]
  %s1 = inlined_call_operand.vmem [shape: f32[32,64], index: 1, kind: input, shape index: {}]
  %s2 = inlined_call_operand.vmem [shape: f32[1,64], index: 2, kind: input, shape index: {}]
  %s3 = inlined_call_operand.vmem [shape: f32[1,64], index: 3, kind: input, shape index: {}]
  %s4 = inlined_call_operand.vmem [shape: f32[1,64], index: 4, kind: input, shape index: {}]
  %s5 = inlined_call_operand.vmem [shape: f32[64,48], index: 5, kind: input, shape index: {}]
  %s6 = inlined_call_operand.vmem [shape: f32[1,48], index: 6, kind: input, shape index: {}]
  %s7 = inlined_call_operand.vmem [shape: f32[1,48], index: 7, kind: input, shape index: {}]
  %s8 = inlined_call_operand.vmem [shape: f32[1,48], index: 8, kind: input, shape index: {}]
  %s9 = inlined_call_operand.vmem [shape: f32[48,8], index: 9, kind: input, shape index: {}]
  %s10 = inlined_call_operand.vmem [shape: f32[1,8], index: 10, kind: input, shape index: {}]
  %s11 = inlined_call_operand.hbm [shape: f32[8,8], index: 11, kind: output, shape index: {}]
  %s12 = sld [smem:[#allocation0]]
  $region54: #{tpu_custom_call.1} parent=0
    _
  %s14 = ssub.s32 1, %s12
  %s15 = scalar_select 0, %s14, %s12
  $region1: #{tpu_custom_call.1} parent=0
    #allocation2 [shape = 'u8[4096]{0}', space=vmem, size = 0x1000, scoped, tag = 'output window, operand 0, single buffered']
    #allocation3 [shape = 's32[1]{0}', space=sflag, size = 0x4, scoped, tag = 'scoped memory for tpu_custom_call.1']
    %16 = vsyncpa [#allocation3], 0
    // Predicated region
    $region2: #{tpu_custom_call.1} parent=1 // pred_check
      _
    $region3: #{tpu_custom_call.1} parent=1 // pred_check_branch
      %18 = sbr.rel (0) target = $region5
    $region4: #{tpu_custom_call.1} parent=1 // pred_region
      _
    $region5: #{tpu_custom_call.1} parent=1 // pred_fallthru
      _
    // Predicated region
    $region6: #{tpu_custom_call.1} parent=1 // pred_check
      _
    $region7: #{tpu_custom_call.1} parent=1 // pred_check_branch
      %20 = sbr.rel (0) target = $region9
    $region8: #{tpu_custom_call.1} parent=1 // pred_region
      _
    $region9: #{tpu_custom_call.1} parent=1 // pred_fallthru
      _
    // Predicated region
    $region10: #{tpu_custom_call.1} parent=1 // pred_check
      _
    $region11: #{tpu_custom_call.1} parent=1 // pred_check_branch
      %22 = sbr.rel (0) target = $region13
    $region12: #{tpu_custom_call.1} parent=1 // pred_region
      _
    $region13: #{tpu_custom_call.1} parent=1 // pred_fallthru
      _
    // Predicated region
    $region14: #{tpu_custom_call.1} parent=1 // pred_check
      _
    $region15: #{tpu_custom_call.1} parent=1 // pred_check_branch
      %24 = sbr.rel (0) target = $region17
    $region16: #{tpu_custom_call.1} parent=1 // pred_region
      _
    $region17: #{tpu_custom_call.1} parent=1 // pred_fallthru
      _
    // Predicated region
    $region18: #{tpu_custom_call.1} parent=1 // pred_check
      _
    $region19: #{tpu_custom_call.1} parent=1 // pred_check_branch
      %26 = sbr.rel (0) target = $region21
    $region20: #{tpu_custom_call.1} parent=1 // pred_region
      _
    $region21: #{tpu_custom_call.1} parent=1 // pred_fallthru
      _
    // Predicated region
    $region22: #{tpu_custom_call.1} parent=1 // pred_check
      _
    $region23: #{tpu_custom_call.1} parent=1 // pred_check_branch
      %28 = sbr.rel (0) target = $region25
    $region24: #{tpu_custom_call.1} parent=1 // pred_region
      _
    $region25: #{tpu_custom_call.1} parent=1 // pred_fallthru
      _
    // Predicated region
    $region26: #{tpu_custom_call.1} parent=1 // pred_check
      _
    $region27: #{tpu_custom_call.1} parent=1 // pred_check_branch
      %30 = sbr.rel (0) target = $region29
    $region28: #{tpu_custom_call.1} parent=1 // pred_region
      _
    $region29: #{tpu_custom_call.1} parent=1 // pred_fallthru
      _
    // Predicated region
    $region30: #{tpu_custom_call.1} parent=1 // pred_check
      _
    $region31: #{tpu_custom_call.1} parent=1 // pred_check_branch
      %32 = sbr.rel (0) target = $region33
    $region32: #{tpu_custom_call.1} parent=1 // pred_region
      _
    $region33: #{tpu_custom_call.1} parent=1 // pred_fallthru
      _
    // Predicated region
    $region34: #{tpu_custom_call.1} parent=1 // pred_check
      _
    $region35: #{tpu_custom_call.1} parent=1 // pred_check_branch
      %34 = sbr.rel (0) target = $region37
    $region36: #{tpu_custom_call.1} parent=1 // pred_region
      _
    $region37: #{tpu_custom_call.1} parent=1 // pred_fallthru
      _
    // Predicated region
    $region38: #{tpu_custom_call.1} parent=1 // pred_check
      _
    $region39: #{tpu_custom_call.1} parent=1 // pred_check_branch
      %36 = sbr.rel (0) target = $region41
    $region40: #{tpu_custom_call.1} parent=1 // pred_region
      _
    $region41: #{tpu_custom_call.1} parent=1 // pred_fallthru
      _
    // Predicated region
    $region42: #{tpu_custom_call.1} parent=1 // pred_check
      _
    $region43: #{tpu_custom_call.1} parent=1 // pred_check_branch
      %38 = sbr.rel (0) target = $region45
    $region44: #{tpu_custom_call.1} parent=1 // pred_region
      _
    $region45: #{tpu_custom_call.1} parent=1 // pred_fallthru
      _
    %v39 = vld [vmem:[%s0] sm:$0xff]
    %v40 = vld [vmem:[%s1] sm:$0xff]
    %v41 = vld [vmem:[%s1 + $0x8] sm:$0xff]
    %v42 = vld [vmem:[%s1 + $0x10] sm:$0xff]
    %v43 = vld [vmem:[%s1 + $0x18] sm:$0xff]
    %v44 = vld [vmem:[%s2] sm:$0x1]
    %v46 = vperm.slane %v44, 0
    %vm48 = vcmask 261120
    %v50 = vsel %vm48, %v39, 0
    %52 = vmatpush.msra.mxu0 0.0
    %53 = vmatpush.msra.mxu0 0.0
    %54 = vmatpush.msra.mxu0 0.0
    %55 = vmatpush.msra.mxu0 0.0
    %56 = vmatpush.msra.mxu0 0.0
    %57 = vmatpush.msra.mxu0 0.0
    %58 = vmatpush.msra.mxu0 0.0
    %59 = vmatpush.msra.mxu0 0.0
    %60 = vmatpush.msra.mxu0 0.0
    %61 = vmatpush.msra.mxu0 0.0
    %62 = vmatpush.msra.mxu0 0.0
    %63 = vmatpush.msra.mxu0 0.0
    %64 = vmatpush.msra.mxu0 %v43
    %65 = vmatpush.msra.mxu0 %v42
    %66 = vmatpush.msra.mxu0 %v41
    %67 = vmatpush.msra.mxu0 %v40
    %68 = vmatmul.f32.gmra.mxu0 %v50
    %v69 = vpop.f32.mrf.mxu0
    %v70 = vadd.f32 %v46, %v69
    %71 = vdwg.mxu0
    %vm72 = vcmask 523264
    %v73 = vsel %vm72, %v70, 0.0
    %74 = vadd.xlane.f32.xlu0 %v73
    %v75 = vpop.xlane.xlu0 %74
    %v76 = vmul.f32 %v70, %v70
    %v77 = vsel %vm72, %v76, 0.0
    %78 = vadd.xlane.f32.xlu0 %v77
    %v79 = vpop.xlane.xlu0 %78
    %v80 = vmul.f32 %v75, 0.015625
    %v81 = vmul.f32 %v79, 0.015625
    %v82 = vmul.f32 %v80, %v80
    %v83 = vsub.f32 %v81, %v82
    %v84 = vld [vmem:[%s3] sm:$0x1]
    %v85 = vadd.f32 %v83, 1e-05
    %v86 = vrsqrt.pop %v85
    %v87 = vmul.f32 %v86, %v85
    %v88 = vmul.f32 %v87, %v86
    %v89 = vmul.f32 0.5, %v88
    %v90 = vsub.f32 1.5, %v89
    %v91 = vmul.f32 %v86, %v90
    %vm92 = vweird.f32 %v85
    %vm93 = vweird.f32 %v86
    %vm94 = vmor %vm92, %vm93
    %v95 = vsel %vm94, %v86, %v91
    %v97 = vperm.slane %v84, 0
    %v99 = vmul.f32 %v97, %v95
    %v100 = vsub.f32 %v70, %v80
    %v101 = vmul.f32 %v100, %v99
    %v102 = vld [vmem:[%s4] sm:$0x1]
    %v104 = vperm.slane %v102, 0
    %v106 = vadd.f32 %v101, %v104
    %v107 = vmax.f32 %v106, 0.0
    %v108 = vld [vmem:[%s5] sm:$0xff]
    %v109 = vld [vmem:[%s5 + $0x8] sm:$0xff]
    %v110 = vld [vmem:[%s5 + $0x10] sm:$0xff]
    %v111 = vld [vmem:[%s5 + $0x18] sm:$0xff]
    %v112 = vld [vmem:[%s5 + $0x20] sm:$0xff]
    %v113 = vld [vmem:[%s5 + $0x28] sm:$0xff]
    %v114 = vld [vmem:[%s5 + $0x30] sm:$0xff]
    %v115 = vld [vmem:[%s5 + $0x38] sm:$0xff]
    %v116 = vld [vmem:[%s6] sm:$0x1]
    %v118 = vperm.slane %v116, 0
    %v121 = vsel %vm72, %v107, 0
    %123 = vmatpush.msra.mxu0 0.0
    %124 = vmatpush.msra.mxu0 0.0
    %125 = vmatpush.msra.mxu0 0.0
    %126 = vmatpush.msra.mxu0 0.0
    %127 = vmatpush.msra.mxu0 0.0
    %128 = vmatpush.msra.mxu0 0.0
    %129 = vmatpush.msra.mxu0 0.0
    %130 = vmatpush.msra.mxu0 0.0
    %131 = vmatpush.msra.mxu0 %v115
    %132 = vmatpush.msra.mxu0 %v114
    %133 = vmatpush.msra.mxu0 %v113
    %134 = vmatpush.msra.mxu0 %v112
    %135 = vmatpush.msra.mxu0 %v111
    %136 = vmatpush.msra.mxu0 %v110
    %137 = vmatpush.msra.mxu0 %v109
    %138 = vmatpush.msra.mxu0 %v108
    %139 = vmatmul.f32.gmra.mxu0 %v121
    %v140 = vpop.f32.mrf.mxu0
    %v141 = vadd.f32 %v118, %v140
    %142 = vdwg.mxu0
    %vm143 = vcmask 392192
    %v144 = vsel %vm143, %v141, 0.0
    %145 = vadd.xlane.f32.xlu0 %v144
    %v146 = vpop.xlane.xlu0 %145
    %v147 = vmul.f32 %v141, %v141
    %v148 = vsel %vm143, %v147, 0.0
    %149 = vadd.xlane.f32.xlu0 %v148
    %v150 = vpop.xlane.xlu0 %149
    %v151 = vmul.f32 %v146, 0.020833334
    %v152 = vmul.f32 %v150, 0.020833334
    %v153 = vmul.f32 %v151, %v151
    %v154 = vsub.f32 %v152, %v153
    %v155 = vld [vmem:[%s7] sm:$0x1]
    %v156 = vadd.f32 %v154, 1e-05
    %v157 = vrsqrt.pop %v156
    %v158 = vmul.f32 %v157, %v156
    %v159 = vmul.f32 %v158, %v157
    %v160 = vmul.f32 0.5, %v159
    %v161 = vsub.f32 1.5, %v160
    %v162 = vmul.f32 %v157, %v161
    %vm163 = vweird.f32 %v156
    %vm164 = vweird.f32 %v157
    %vm165 = vmor %vm163, %vm164
    %v166 = vsel %vm165, %v157, %v162
    %v168 = vperm.slane %v155, 0
    %v170 = vmul.f32 %v168, %v166
    %v171 = vsub.f32 %v141, %v151
    %v172 = vmul.f32 %v171, %v170
    %v173 = vld [vmem:[%s8] sm:$0x1]
    %v175 = vperm.slane %v173, 0
    %v177 = vadd.f32 %v172, %v175
    %v178 = vmax.f32 %v177, 0.0
    %v179 = vld [vmem:[%s9] sm:$0xff]
    %v180 = vld [vmem:[%s9 + $0x8] sm:$0xff]
    %v181 = vld [vmem:[%s9 + $0x10] sm:$0xff]
    %v182 = vld [vmem:[%s9 + $0x18] sm:$0xff]
    %v183 = vld [vmem:[%s9 + $0x20] sm:$0xff]
    %v184 = vld [vmem:[%s9 + $0x28] sm:$0xff]
    %v185 = vld [vmem:[%s10] sm:$0x1]
    %v187 = vperm.slane %v185, 0
    %v190 = vsel %vm143, %v178, 0
    %192 = vmatpush.msra.mxu0 0.0
    %193 = vmatpush.msra.mxu0 0.0
    %194 = vmatpush.msra.mxu0 0.0
    %195 = vmatpush.msra.mxu0 0.0
    %196 = vmatpush.msra.mxu0 0.0
    %197 = vmatpush.msra.mxu0 0.0
    %198 = vmatpush.msra.mxu0 0.0
    %199 = vmatpush.msra.mxu0 0.0
    %200 = vmatpush.msra.mxu0 0.0
    %201 = vmatpush.msra.mxu0 0.0
    %202 = vmatpush.msra.mxu0 %v184
    %203 = vmatpush.msra.mxu0 %v183
    %204 = vmatpush.msra.mxu0 %v182
    %205 = vmatpush.msra.mxu0 %v181
    %206 = vmatpush.msra.mxu0 %v180
    %207 = vmatpush.msra.mxu0 %v179
    %208 = vmatmul.f32.gmra.mxu0 %v190
    %v209 = vpop.f32.mrf.mxu0
    %v210 = vadd.f32 %v187, %v209
    %211 = vdwg.mxu0
    %vm212 = vcmask 64512
    %213 = vst.msk [vmem:[#allocation2] sm:$0xff] %vm212, %v210
    // Predicated region
    $region46: #{tpu_custom_call.1} parent=1 // pred_check
      _
    $region47: #{tpu_custom_call.1} parent=1 // pred_check_branch
      %215 = sbr.rel (0) target = $region49
    $region48: #{tpu_custom_call.1} parent=1 // pred_region
      %217 = vsyncadd [#allocation3], 0
      %s219 = sshll.u32 [#allocation2], 4
      %s220 = int_to_ptr.vmem [resolvable:$true] %s219
      %s221 = sshll.u32 %s11, 4
      %s222 = int_to_ptr.hbm [resolvable:$true] %s221
      %224 = dma.vmem_to_hbm [thread:$0]  %s220, 128, %s222, [#allocation3]
    $region49: #{tpu_custom_call.1} parent=1 // pred_fallthru
      _
    // Predicated region
    $region50: #{tpu_custom_call.1} parent=1 // pred_check
      _
    $region51: #{tpu_custom_call.1} parent=1 // pred_check_branch
      %226 = sbr.rel (0) target = $region53
    $region52: #{tpu_custom_call.1} parent=1 // pred_region
      %228 = dma.done [#allocation3], 128
    $region53: #{tpu_custom_call.1} parent=1 // pred_fallthru
      _
    %229 = vsyncpa [#allocation3], 1

</llo_original>
